<compile_context>
chip_gen: v6e
topology: v6e:2x2x1
jax: 0.10.0
libtpu: 0.0.40
codegen_flags: <defaults>
</compile_context>

<pallas_src>
import functools
import math

import jax
import jax.numpy as jnp
import numpy as np
from jax import lax
from jax.experimental import pallas as pl
from jax.experimental.pallas import tpu as pltpu


# ---------------------------------------------------------------------------
# Fused kernel: projections + attention + trans_conv + BN + ReLU + residual.
# ---------------------------------------------------------------------------
def _cross_attention_kernel(q_ref, kv_ref, bias_ref, wq_ref, wk_ref, wv_ref,
                            wt_ref, bt_ref, gamma_ref, beta_ref, out_ref,
                            *, eps, compute_dtype):
    f32 = jnp.float32
    cd = compute_dtype

    q = q_ref[...]                                                     # (BN, C) f32
    kv = kv_ref[...]                                                   # (BN, C) f32

    qc = q.astype(cd)
    kvc = kv.astype(cd)

    # 1x1-conv projections with batch folded into rows (one MXU push each).
    # wq is pre-scaled by 1/sqrt(C/4); all weights are (C_in, C_out).
    q_proj = jnp.dot(qc, wq_ref[...], preferred_element_type=f32)      # (BN, C4)
    k_proj = jnp.dot(kvc, wk_ref[...], preferred_element_type=f32)     # (BN, C4)
    v_proj = jnp.dot(kvc, wv_ref[...], preferred_element_type=f32)     # (BN, C)

    # Per-batch attention via a block-diagonal additive mask on folded rows.
    energy = jnp.einsum('qd,kd->qk', q_proj, k_proj,
                        preferred_element_type=f32)                    # (BN, BN)
    energy = energy + bias_ref[...]                                    # -1e30 off-block

    m = jnp.max(energy, axis=-1, keepdims=True)
    p = jnp.exp(energy - m)
    denom = jnp.sum(p, axis=-1, keepdims=True)
    attn = p * pl.reciprocal(denom, approx=False)                      # exact softmax

    x_r = jnp.dot(attn, v_proj, preferred_element_type=f32)            # (BN, C)

    res = q - x_r
    t = jnp.dot(res.astype(cd), wt_ref[...],
                preferred_element_type=f32) + bt_ref[...]              # (BN, C) f32

    # Training-mode BatchNorm1d: per-channel stats over all batch*points rows.
    mean = jnp.mean(t, axis=0, keepdims=True)                          # (1, C)
    centered = t - mean
    var = jnp.mean(centered * centered, axis=0, keepdims=True)         # biased var
    var = jnp.maximum(var, 0.0)
    inv_std = lax.rsqrt(var + eps)

    y = centered * (inv_std * gamma_ref[...]) + beta_ref[...]
    out_ref[...] = (jnp.maximum(y, 0.0) + q).astype(out_ref.dtype)


# ---------------------------------------------------------------------------
# Wrapper
# ---------------------------------------------------------------------------
def cross_attention_pallas(q, kv, wq, wk, wv, wt, bt, gamma, beta,
                           *, compute_dtype=jnp.float32):
    """CrossAttention forward.  q, kv: (B, N, C) float32.

    compute_dtype: operand dtype for the projection / trans_conv matmul
    inputs (float32 is the right choice at these tiny contraction sizes);
    softmax, residual, energy/attn·V matmuls and BatchNorm stay float32.
    """
    B, N, C = q.shape
    C4 = wq.shape[0]
    BN = B * N
    scale = 1.0 / math.sqrt(C4)
    eps = 1e-5
    f32 = jnp.float32
    cd = compute_dtype

    # Fold batch into rows so every 1x1 conv is a single 2-D MXU matmul.
    q2 = q.reshape(BN, C).astype(f32)
    kv2 = kv.reshape(BN, C).astype(f32)

    # Block-diagonal additive mask: 0 within a batch, -1e30 across batches.
    batch_ids = jnp.arange(BN, dtype=jnp.int32) // N
    attn_bias = jnp.where(batch_ids[:, None] == batch_ids[None, :],
                          jnp.float32(0.0), jnp.float32(-1e30))

    # Wrapper-side weight prep (pure layout / constant folding, done by XLA):
    # pre-transpose to (C_in, C_out), fold attention scale into wq.
    wq_p = (wq.T * scale).astype(cd)                                   # (C, C4)
    wk_p = wk.T.astype(cd)                                             # (C, C4)
    wv_p = wv.T.astype(cd)                                             # (C, C)
    wt_p = wt.T.astype(cd)                                             # (C, C)
    bt_p = bt.reshape(1, C).astype(f32)
    gamma_p = gamma.reshape(1, C).astype(f32)
    beta_p = beta.reshape(1, C).astype(f32)

    flops = 2 * BN * (2 * C * C4 + 2 * C * C + BN * C4 + BN * C) + 12 * BN * C
    bytes_acc = 4 * (3 * BN * C + BN * BN + 2 * C * C4 + 2 * C * C + 3 * C)

    def full(shape):
        nd = len(shape)
        return pl.BlockSpec(shape, lambda i, _nd=nd: (0,) * _nd)

    out2 = pl.pallas_call(
        functools.partial(_cross_attention_kernel, eps=eps, compute_dtype=cd),
        grid=(1,),
        in_specs=[
            full((BN, C)),          # q  (batch folded into rows)
            full((BN, C)),          # kv
            full((BN, BN)),         # block-diagonal attention bias
            full((C, C4)),          # wq (pre-scaled by 1/sqrt(C4))
            full((C, C4)),          # wk
            full((C, C)),           # wv
            full((C, C)),           # wt
            full((1, C)),           # bt
            full((1, C)),           # gamma
            full((1, C)),           # beta
        ],
        out_specs=full((BN, C)),
        out_shape=jax.ShapeDtypeStruct((BN, C), q.dtype),
        compiler_params=pltpu.CompilerParams(
            dimension_semantics=("arbitrary",),
            vmem_limit_bytes=32 * 1024 * 1024),
        cost_estimate=pl.CostEstimate(flops=flops, transcendentals=BN * BN,
                                      bytes_accessed=bytes_acc),
    )(q2, kv2, attn_bias, wq_p, wk_p, wv_p, wt_p, bt_p, gamma_p, beta_p)
    return out2.reshape(B, N, C)


# ---------------------------------------------------------------------------
# Pure-JAX reference (the PyTorch forward, training-mode BN).
# compute_dtype=float32  -> exact module semantics.
# compute_dtype=bfloat16 -> mirrors the kernel's mixed-precision operand
# placement (bf16 projection/trans_conv inputs, f32 everything else).
# ---------------------------------------------------------------------------
def cross_attention_ref(q, kv, wq, wk, wv, wt, bt, gamma, beta,
                        *, compute_dtype=jnp.float32):
    C4 = wq.shape[0]
    B, N, C = q.shape
    scale = 1.0 / math.sqrt(C4)
    cd = compute_dtype
    f32 = jnp.float32

    wq_p = (wq.T * scale).astype(cd)
    wk_p = wk.T.astype(cd)
    wv_p = wv.T.astype(cd)
    wt_p = wt.T.astype(cd)

    x_q = jnp.einsum('bnc,cd->bnd', q.astype(cd), wq_p, preferred_element_type=f32)
    x_k = jnp.einsum('bnc,cd->bnd', kv.astype(cd), wk_p, preferred_element_type=f32)
    x_v = jnp.einsum('bnc,cd->bnd', kv.astype(cd), wv_p, preferred_element_type=f32)
    energy = jnp.einsum('bqd,bkd->bqk', x_q, x_k, preferred_element_type=f32)
    attn = jax.nn.softmax(energy, axis=-1)
    x_r = jnp.einsum('bqk,bkc->bqc', attn, x_v, preferred_element_type=f32)
    res = q - x_r
    t = jnp.einsum('bnc,cd->bnd', res.astype(cd), wt_p,
                   preferred_element_type=f32) + bt.reshape(1, 1, C)
    mean = jnp.mean(t, axis=(0, 1), keepdims=True)
    var = jnp.mean((t - mean) ** 2, axis=(0, 1), keepdims=True)
    bn = (t - mean) * lax.rsqrt(var + 1e-5) * gamma.reshape(1, 1, C) + beta.reshape(1, 1, C)
    return jnp.maximum(bn, 0.0) + q


if __name__ == "__main__":
    B, N, C = 2, 8, 32          # batch, sequence (points), channels
    C4 = C // 4

    key = jax.random.PRNGKey(0)
    k_q, k_kv, k_wq, k_wk, k_wv, k_wt, k_bt = jax.random.split(key, 7)

    q_tensor = jax.random.normal(k_q, (B, N, C), dtype=jnp.float32)
    kv_tensor = jax.random.normal(k_kv, (B, N, C), dtype=jnp.float32)

    # Deterministic parameter init (Conv1d-style fan-in scaling).
    wq = jax.random.normal(k_wq, (C4, C), jnp.float32) * (1.0 / math.sqrt(C))
    wk = jax.random.normal(k_wk, (C4, C), jnp.float32) * (1.0 / math.sqrt(C))
    wv = jax.random.normal(k_wv, (C, C), jnp.float32) * (1.0 / math.sqrt(C))
    wt = jax.random.normal(k_wt, (C, C), jnp.float32) * (1.0 / math.sqrt(C))
    bt = jax.random.normal(k_bt, (1, C), jnp.float32) * (1.0 / math.sqrt(C))
    gamma = jnp.ones((1, C), jnp.float32)   # BatchNorm weight
    beta = jnp.zeros((1, C), jnp.float32)   # BatchNorm bias

    args = (q_tensor, kv_tensor, wq, wk, wv, wt, bt, gamma, beta)

    # 1) Default full-f32 path: checks exact module semantics.
    out_f32 = jax.block_until_ready(cross_attention_pallas(*args))
    ref_f32 = cross_attention_ref(*args, compute_dtype=jnp.float32)
    np.testing.assert_allclose(np.asarray(out_f32), np.asarray(ref_f32),
                               rtol=2e-2, atol=2e-2)

    # 2) Optional mixed-precision path (bf16 projection/trans_conv inputs,
    #    f32 everything else), checked against a precision-matched reference.
    out_bf16 = jax.block_until_ready(
        cross_attention_pallas(*args, compute_dtype=jnp.bfloat16))
    ref_bf16 = cross_attention_ref(*args, compute_dtype=jnp.bfloat16)
    np.testing.assert_allclose(np.asarray(out_bf16), np.asarray(ref_bf16),
                               rtol=2e-2, atol=2e-2)

    print("KERNEL_OK")
</pallas_src>

<mosaic_0001>
module attributes {stable_mosaic.version = 11 : i64} {
  func.func @_cross_attention_kernel(%arg0: i32, %arg1: memref<16x32xf32, #tpu.memory_space<vmem>>, %arg2: memref<16x32xf32, #tpu.memory_space<vmem>>, %arg3: memref<16x16xf32, #tpu.memory_space<vmem>>, %arg4: memref<32x8xf32, #tpu.memory_space<vmem>>, %arg5: memref<32x8xf32, #tpu.memory_space<vmem>>, %arg6: memref<32x32xf32, #tpu.memory_space<vmem>>, %arg7: memref<32x32xf32, #tpu.memory_space<vmem>>, %arg8: memref<1x32xf32, #tpu.memory_space<vmem>>, %arg9: memref<1x32xf32, #tpu.memory_space<vmem>>, %arg10: memref<1x32xf32, #tpu.memory_space<vmem>>, %arg11: memref<16x32xf32, #tpu.memory_space<vmem>>) attributes {dimension_semantics = [#tpu.dimension_semantics<arbitrary>], iteration_bounds = array<i64: 1>, scalar_prefetch = 0 : i64, scratch_operands = 0 : i64, tpu.core_type = #tpu.core_type<tc>, window_params = [{pipeline_mode = #tpu.pipeline_mode<synchronous>, transform_indices = @transform_0, window_bounds = array<i64: 16, 32>}, {pipeline_mode = #tpu.pipeline_mode<synchronous>, transform_indices = @transform_1, window_bounds = array<i64: 16, 32>}, {pipeline_mode = #tpu.pipeline_mode<synchronous>, transform_indices = @transform_2, window_bounds = array<i64: 16, 16>}, {pipeline_mode = #tpu.pipeline_mode<synchronous>, transform_indices = @transform_3, window_bounds = array<i64: 32, 8>}, {pipeline_mode = #tpu.pipeline_mode<synchronous>, transform_indices = @transform_4, window_bounds = array<i64: 32, 8>}, {pipeline_mode = #tpu.pipeline_mode<synchronous>, transform_indices = @transform_5, window_bounds = array<i64: 32, 32>}, {pipeline_mode = #tpu.pipeline_mode<synchronous>, transform_indices = @transform_6, window_bounds = array<i64: 32, 32>}, {pipeline_mode = #tpu.pipeline_mode<synchronous>, transform_indices = @transform_7, window_bounds = array<i64: 1, 32>}, {pipeline_mode = #tpu.pipeline_mode<synchronous>, transform_indices = @transform_8, window_bounds = array<i64: 1, 32>}, {pipeline_mode = #tpu.pipeline_mode<synchronous>, transform_indices = @transform_9, window_bounds = array<i64: 1, 32>}, {pipeline_mode = #tpu.pipeline_mode<synchronous>, transform_indices = @transform_10, window_bounds = array<i64: 16, 32>}]} {
    %c0 = arith.constant 0 : index
    %c0_0 = arith.constant 0 : index
    %0 = vector.load %arg1[%c0, %c0_0] : memref<16x32xf32, #tpu.memory_space<vmem>>, vector<16x32xf32>
    %c0_1 = arith.constant 0 : index
    %c0_2 = arith.constant 0 : index
    %1 = vector.load %arg2[%c0_1, %c0_2] : memref<16x32xf32, #tpu.memory_space<vmem>>, vector<16x32xf32>
    %c0_3 = arith.constant 0 : index
    %c0_4 = arith.constant 0 : index
    %2 = vector.load %arg4[%c0_3, %c0_4] : memref<32x8xf32, #tpu.memory_space<vmem>>, vector<32x8xf32>
    %cst = arith.constant dense<0.000000e+00> : vector<16x8xf32>
    %3 = tpu.matmul %0, %2, %cst {dimension_numbers = #tpu.dot_dimension_numbers<[1], [0], [0], [1], [0, 0, 1, 1], [], []>} : vector<16x32xf32>, vector<32x8xf32>, vector<16x8xf32> -> vector<16x8xf32>
    %c0_5 = arith.constant 0 : index
    %c0_6 = arith.constant 0 : index
    %4 = vector.load %arg5[%c0_5, %c0_6] : memref<32x8xf32, #tpu.memory_space<vmem>>, vector<32x8xf32>
    %cst_7 = arith.constant dense<0.000000e+00> : vector<16x8xf32>
    %5 = tpu.matmul %1, %4, %cst_7 {dimension_numbers = #tpu.dot_dimension_numbers<[1], [0], [0], [1], [0, 0, 1, 1], [], []>} : vector<16x32xf32>, vector<32x8xf32>, vector<16x8xf32> -> vector<16x8xf32>
    %c0_8 = arith.constant 0 : index
    %c0_9 = arith.constant 0 : index
    %6 = vector.load %arg6[%c0_8, %c0_9] : memref<32x32xf32, #tpu.memory_space<vmem>>, vector<32x32xf32>
    %cst_10 = arith.constant dense<0.000000e+00> : vector<16x32xf32>
    %7 = tpu.matmul %1, %6, %cst_10 {dimension_numbers = #tpu.dot_dimension_numbers<[1], [0], [0], [1], [0, 0, 1, 1], [], []>} : vector<16x32xf32>, vector<32x32xf32>, vector<16x32xf32> -> vector<16x32xf32>
    "tpu.trace_start"() <{level = 10 : i32, message = "qd,kd->qk"}> : () -> ()
    %cst_11 = arith.constant dense<0.000000e+00> : vector<16x16xf32>
    %8 = tpu.matmul %3, %5, %cst_11 {dimension_numbers = #tpu.dot_dimension_numbers<[1], [1], [0], [0], [0, 0, 1, 0], [], []>} : vector<16x8xf32>, vector<16x8xf32>, vector<16x16xf32> -> vector<16x16xf32>
    "tpu.trace_stop"() : () -> ()
    %c0_12 = arith.constant 0 : index
    %c0_13 = arith.constant 0 : index
    %9 = vector.load %arg3[%c0_12, %c0_13] : memref<16x16xf32, #tpu.memory_space<vmem>>, vector<16x16xf32>
    %10 = arith.addf %8, %9 : vector<16x16xf32>
    %cst_14 = arith.constant dense<0xFF800000> : vector<16xf32>
    %11 = vector.multi_reduction <maximumf>, %10, %cst_14 [1] : vector<16x16xf32> to vector<16xf32>
    %12 = vector.shape_cast %11 : vector<16xf32> to vector<16x1xf32>
    %13 = vector.broadcast %12 : vector<16x1xf32> to vector<16x16xf32>
    %14 = arith.subf %10, %13 : vector<16x16xf32>
    %15 = math.exp %14 : vector<16x16xf32>
    %cst_15 = arith.constant dense<0.000000e+00> : vector<16xf32>
    %16 = vector.multi_reduction <add>, %15, %cst_15 [1] : vector<16x16xf32> to vector<16xf32>
    %17 = vector.shape_cast %16 : vector<16xf32> to vector<16x1xf32>
    %18 = tpu.reciprocal %17 : vector<16x1xf32> -> vector<16x1xf32>
    %19 = vector.broadcast %18 : vector<16x1xf32> to vector<16x16xf32>
    %20 = arith.mulf %15, %19 : vector<16x16xf32>
    %cst_16 = arith.constant dense<0.000000e+00> : vector<16x32xf32>
    %21 = tpu.matmul %20, %7, %cst_16 {dimension_numbers = #tpu.dot_dimension_numbers<[1], [0], [0], [1], [0, 0, 1, 1], [], []>} : vector<16x16xf32>, vector<16x32xf32>, vector<16x32xf32> -> vector<16x32xf32>
    %22 = arith.subf %0, %21 : vector<16x32xf32>
    %c0_17 = arith.constant 0 : index
    %c0_18 = arith.constant 0 : index
    %23 = vector.load %arg7[%c0_17, %c0_18] : memref<32x32xf32, #tpu.memory_space<vmem>>, vector<32x32xf32>
    %cst_19 = arith.constant dense<0.000000e+00> : vector<16x32xf32>
    %24 = tpu.matmul %22, %23, %cst_19 {dimension_numbers = #tpu.dot_dimension_numbers<[1], [0], [0], [1], [0, 0, 1, 1], [], []>} : vector<16x32xf32>, vector<32x32xf32>, vector<16x32xf32> -> vector<16x32xf32>
    %c0_20 = arith.constant 0 : index
    %c0_21 = arith.constant 0 : index
    %25 = vector.load %arg8[%c0_20, %c0_21] : memref<1x32xf32, #tpu.memory_space<vmem>>, vector<1x32xf32>
    %26 = vector.broadcast %25 : vector<1x32xf32> to vector<16x32xf32>
    %27 = arith.addf %24, %26 : vector<16x32xf32>
    %cst_22 = arith.constant dense<0.000000e+00> : vector<32xf32>
    %28 = vector.multi_reduction <add>, %27, %cst_22 [0] : vector<16x32xf32> to vector<32xf32>
    %29 = vector.shape_cast %28 : vector<32xf32> to vector<1x32xf32>
    %cst_23 = arith.constant 1.600000e+01 : f32
    %30 = vector.broadcast %cst_23 : f32 to vector<1x32xf32>
    %31 = arith.divf %29, %30 : vector<1x32xf32>
    %32 = vector.broadcast %31 : vector<1x32xf32> to vector<16x32xf32>
    %33 = arith.subf %27, %32 : vector<16x32xf32>
    %34 = arith.mulf %33, %33 : vector<16x32xf32>
    %cst_24 = arith.constant dense<0.000000e+00> : vector<32xf32>
    %35 = vector.multi_reduction <add>, %34, %cst_24 [0] : vector<16x32xf32> to vector<32xf32>
    %36 = vector.shape_cast %35 : vector<32xf32> to vector<1x32xf32>
    %cst_25 = arith.constant 1.600000e+01 : f32
    %37 = vector.broadcast %cst_25 : f32 to vector<1x32xf32>
    %38 = arith.divf %36, %37 : vector<1x32xf32>
    %cst_26 = arith.constant 0.000000e+00 : f32
    %39 = vector.broadcast %cst_26 : f32 to vector<1x32xf32>
    %40 = arith.maximumf %38, %39 : vector<1x32xf32>
    %cst_27 = arith.constant 9.99999974E-6 : f32
    %41 = vector.broadcast %cst_27 : f32 to vector<1x32xf32>
    %42 = arith.addf %40, %41 : vector<1x32xf32>
    %43 = math.rsqrt %42 : vector<1x32xf32>
    %c0_28 = arith.constant 0 : index
    %c0_29 = arith.constant 0 : index
    %44 = vector.load %arg9[%c0_28, %c0_29] : memref<1x32xf32, #tpu.memory_space<vmem>>, vector<1x32xf32>
    %45 = arith.mulf %43, %44 : vector<1x32xf32>
    %46 = vector.broadcast %45 : vector<1x32xf32> to vector<16x32xf32>
    %47 = arith.mulf %33, %46 : vector<16x32xf32>
    %c0_30 = arith.constant 0 : index
    %c0_31 = arith.constant 0 : index
    %48 = vector.load %arg10[%c0_30, %c0_31] : memref<1x32xf32, #tpu.memory_space<vmem>>, vector<1x32xf32>
    %49 = vector.broadcast %48 : vector<1x32xf32> to vector<16x32xf32>
    %50 = arith.addf %47, %49 : vector<16x32xf32>
    %cst_32 = arith.constant 0.000000e+00 : f32
    %51 = vector.broadcast %cst_32 : f32 to vector<16x32xf32>
    %52 = arith.maximumf %50, %51 : vector<16x32xf32>
    %53 = arith.addf %52, %0 : vector<16x32xf32>
    %c0_33 = arith.constant 0 : index
    %c0_34 = arith.constant 0 : index
    %54 = vector.load %arg11[%c0_33, %c0_34] : memref<16x32xf32, #tpu.memory_space<vmem>>, vector<16x32xf32>
    tpu.vector_store %arg11[%c0_33, %c0_34], %53 {strides = array<i32>} : memref<16x32xf32, #tpu.memory_space<vmem>>, vector<16x32xf32>,
    return
  }
  func.func @transform_0(%arg0: i32) -> (i32, i32) {
    %c0_i32 = arith.constant 0 : i32
    %c0_i32_0 = arith.constant 0 : i32
    %c0_i32_1 = arith.constant 0 : i32
    return %c0_i32, %c0_i32_0 : i32, i32
  }
  func.func @transform_1(%arg0: i32) -> (i32, i32) {
    %c0_i32 = arith.constant 0 : i32
    %c0_i32_0 = arith.constant 0 : i32
    %c0_i32_1 = arith.constant 0 : i32
    return %c0_i32, %c0_i32_0 : i32, i32
  }
  func.func @transform_2(%arg0: i32) -> (i32, i32) {
    %c0_i32 = arith.constant 0 : i32
    %c0_i32_0 = arith.constant 0 : i32
    %c0_i32_1 = arith.constant 0 : i32
    return %c0_i32, %c0_i32_0 : i32, i32
  }
  func.func @transform_3(%arg0: i32) -> (i32, i32) {
    %c0_i32 = arith.constant 0 : i32
    %c0_i32_0 = arith.constant 0 : i32
    %c0_i32_1 = arith.constant 0 : i32
    return %c0_i32, %c0_i32_0 : i32, i32
  }
  func.func @transform_4(%arg0: i32) -> (i32, i32) {
    %c0_i32 = arith.constant 0 : i32
    %c0_i32_0 = arith.constant 0 : i32
    %c0_i32_1 = arith.constant 0 : i32
    return %c0_i32, %c0_i32_0 : i32, i32
  }
  func.func @transform_5(%arg0: i32) -> (i32, i32) {
    %c0_i32 = arith.constant 0 : i32
    %c0_i32_0 = arith.constant 0 : i32
    %c0_i32_1 = arith.constant 0 : i32
    return %c0_i32, %c0_i32_0 : i32, i32
  }
  func.func @transform_6(%arg0: i32) -> (i32, i32) {
    %c0_i32 = arith.constant 0 : i32
    %c0_i32_0 = arith.constant 0 : i32
    %c0_i32_1 = arith.constant 0 : i32
    return %c0_i32, %c0_i32_0 : i32, i32
  }
  func.func @transform_7(%arg0: i32) -> (i32, i32) {
    %c0_i32 = arith.constant 0 : i32
    %c0_i32_0 = arith.constant 0 : i32
    %c0_i32_1 = arith.constant 0 : i32
    return %c0_i32, %c0_i32_0 : i32, i32
  }
  func.func @transform_8(%arg0: i32) -> (i32, i32) {
    %c0_i32 = arith.constant 0 : i32
    %c0_i32_0 = arith.constant 0 : i32
    %c0_i32_1 = arith.constant 0 : i32
    return %c0_i32, %c0_i32_0 : i32, i32
  }
  func.func @transform_9(%arg0: i32) -> (i32, i32) {
    %c0_i32 = arith.constant 0 : i32
    %c0_i32_0 = arith.constant 0 : i32
    %c0_i32_1 = arith.constant 0 : i32
    return %c0_i32, %c0_i32_0 : i32, i32
  }
  func.func @transform_10(%arg0: i32) -> (i32, i32) {
    %c0_i32 = arith.constant 0 : i32
    %c0_i32_0 = arith.constant 0 : i32
    %c0_i32_1 = arith.constant 0 : i32
    return %c0_i32, %c0_i32_0 : i32, i32
  }
}

</mosaic_0001>

<llo_original>
// kernel: tpu_custom_call.1
$region0: #{tpu_custom_call.1}
  #allocation0 [shape = 'u32[]', space=smem, size = 0x4, offset = 0x4, fixed_abs, tag = 'smem constant byte address 0x4 - core index']
  #allocation1 [shape = 'u32[144,128]{1,0:T(1,128)}', space=vmem, size = 0x12000, scoped, tag = 'internal scratch']
  %s0 = inlined_call_operand.vmem [shape: f32[16,32], index: 0, kind: input, shape index: {}]
  %s1 = inlined_call_operand.hbm [shape: f32[16,32], index: 1, kind: input, shape index: {}]
  %s2 = inlined_call_operand.hbm [shape: f32[16,16], index: 2, kind: input, shape index: {}]
  %s3 = inlined_call_operand.vmem [shape: f32[32,8], index: 3, kind: input, shape index: {}]
  %s4 = inlined_call_operand.vmem [shape: f32[32,8], index: 4, kind: input, shape index: {}]
  %s5 = inlined_call_operand.vmem [shape: f32[32,32], index: 5, kind: input, shape index: {}]
  %s6 = inlined_call_operand.vmem [shape: f32[32,32], index: 6, kind: input, shape index: {}]
  %s7 = inlined_call_operand.vmem [shape: f32[1,32], index: 7, kind: input, shape index: {}]
  %s8 = inlined_call_operand.vmem [shape: f32[1,32], index: 8, kind: input, shape index: {}]
  %s9 = inlined_call_operand.vmem [shape: f32[1,32], index: 9, kind: input, shape index: {}]
  %s10 = inlined_call_operand.hbm [shape: f32[16,32], index: 10, kind: output, shape index: {}]
  %s11 = sld [smem:[#allocation0]]
  $region58: #{tpu_custom_call.1} parent=0
    _
  %s13 = ssub.s32 1, %s11
  %s14 = scalar_select 0, %s13, %s11
  $region1: #{tpu_custom_call.1} parent=0
    #allocation2 [shape = 'u8[8192]{0}', space=vmem, size = 0x2000, scoped, tag = 'input window, operand 1, single buffered']
    #allocation3 [shape = 's32[1]{0}', space=sflag, size = 0x4, scoped, tag = 'scoped memory for tpu_custom_call.1']
    #allocation4 [shape = 's32[1]{0}', space=sflag, size = 0x4, scoped, tag = 'scoped memory for tpu_custom_call.1']
    #allocation5 [shape = 'u8[8192]{0}', space=vmem, size = 0x2000, scoped, tag = 'input window, operand 2, single buffered']
    #allocation6 [shape = 's32[1]{0}', space=sflag, size = 0x4, scoped, tag = 'scoped memory for tpu_custom_call.1']
    #allocation7 [shape = 'u8[8192]{0}', space=vmem, size = 0x2000, scoped, tag = 'output window, operand 0, single buffered']
    %15 = vsyncpa [#allocation3], 0
    %16 = vsyncpa [#allocation6], 0
    %17 = vsyncpa [#allocation4], 0
    // Predicated region
    $region2: #{tpu_custom_call.1} parent=1 // pred_check
      _
    $region3: #{tpu_custom_call.1} parent=1 // pred_check_branch
      %19 = sbr.rel (0) target = $region5
    $region4: #{tpu_custom_call.1} parent=1 // pred_region
      _
    $region5: #{tpu_custom_call.1} parent=1 // pred_fallthru
      _
    // Predicated region
    $region6: #{tpu_custom_call.1} parent=1 // pred_check
      _
    $region7: #{tpu_custom_call.1} parent=1 // pred_check_branch
      %21 = sbr.rel (0) target = $region9
    $region8: #{tpu_custom_call.1} parent=1 // pred_region
      %s23 = ssub.s32 256, 256
      %24 = vsyncadd [#allocation3], %s23
      %s25 = sshll.u32 [#allocation2], 4
      %s26 = int_to_ptr.vmem [resolvable:$true] %s25
      %31 = dma.hbm_to_vmem [thread:$0]  %s1, 256, %s26, [#allocation3], 128, 128, 8
    $region9: #{tpu_custom_call.1} parent=1 // pred_fallthru
      _
    // Predicated region
    $region10: #{tpu_custom_call.1} parent=1 // pred_check
      _
    $region11: #{tpu_custom_call.1} parent=1 // pred_check_branch
      %33 = sbr.rel (0) target = $region13
    $region12: #{tpu_custom_call.1} parent=1 // pred_region
      %s35 = ssub.s32 256, 256
      %36 = vsyncadd [#allocation6], %s35
      %s37 = sshll.u32 [#allocation5], 4
      %s38 = int_to_ptr.vmem [resolvable:$true] %s37
      %43 = dma.hbm_to_vmem [thread:$0]  %s2, 256, %s38, [#allocation6], 128, 128, 8
    $region13: #{tpu_custom_call.1} parent=1 // pred_fallthru
      _
    // Predicated region
    $region14: #{tpu_custom_call.1} parent=1 // pred_check
      _
    $region15: #{tpu_custom_call.1} parent=1 // pred_check_branch
      %45 = sbr.rel (0) target = $region17
    $region16: #{tpu_custom_call.1} parent=1 // pred_region
      _
    $region17: #{tpu_custom_call.1} parent=1 // pred_fallthru
      _
    // Predicated region
    $region18: #{tpu_custom_call.1} parent=1 // pred_check
      _
    $region19: #{tpu_custom_call.1} parent=1 // pred_check_branch
      %47 = sbr.rel (0) target = $region21
    $region20: #{tpu_custom_call.1} parent=1 // pred_region
      _
    $region21: #{tpu_custom_call.1} parent=1 // pred_fallthru
      _
    // Predicated region
    $region22: #{tpu_custom_call.1} parent=1 // pred_check
      _
    $region23: #{tpu_custom_call.1} parent=1 // pred_check_branch
      %49 = sbr.rel (0) target = $region25
    $region24: #{tpu_custom_call.1} parent=1 // pred_region
      _
    $region25: #{tpu_custom_call.1} parent=1 // pred_fallthru
      _
    // Predicated region
    $region26: #{tpu_custom_call.1} parent=1 // pred_check
      _
    $region27: #{tpu_custom_call.1} parent=1 // pred_check_branch
      %51 = sbr.rel (0) target = $region29
    $region28: #{tpu_custom_call.1} parent=1 // pred_region
      _
    $region29: #{tpu_custom_call.1} parent=1 // pred_fallthru
      _
    // Predicated region
    $region30: #{tpu_custom_call.1} parent=1 // pred_check
      _
    $region31: #{tpu_custom_call.1} parent=1 // pred_check_branch
      %53 = sbr.rel (0) target = $region33
    $region32: #{tpu_custom_call.1} parent=1 // pred_region
      _
    $region33: #{tpu_custom_call.1} parent=1 // pred_fallthru
      _
    // Predicated region
    $region34: #{tpu_custom_call.1} parent=1 // pred_check
      _
    $region35: #{tpu_custom_call.1} parent=1 // pred_check_branch
      %55 = sbr.rel (0) target = $region37
    $region36: #{tpu_custom_call.1} parent=1 // pred_region
      _
    $region37: #{tpu_custom_call.1} parent=1 // pred_fallthru
      _
    // Predicated region
    $region38: #{tpu_custom_call.1} parent=1 // pred_check
      _
    $region39: #{tpu_custom_call.1} parent=1 // pred_check_branch
      %57 = sbr.rel (0) target = $region41
    $region40: #{tpu_custom_call.1} parent=1 // pred_region
      _
    $region41: #{tpu_custom_call.1} parent=1 // pred_fallthru
      _
    // Predicated region
    $region42: #{tpu_custom_call.1} parent=1 // pred_check
      _
    $region43: #{tpu_custom_call.1} parent=1 // pred_check_branch
      %59 = sbr.rel (0) target = $region45
    $region44: #{tpu_custom_call.1} parent=1 // pred_region
      %60 = dma.done [#allocation3], 256
    $region45: #{tpu_custom_call.1} parent=1 // pred_fallthru
      _
    // Predicated region
    $region46: #{tpu_custom_call.1} parent=1 // pred_check
      _
    $region47: #{tpu_custom_call.1} parent=1 // pred_check_branch
      %62 = sbr.rel (0) target = $region49
    $region48: #{tpu_custom_call.1} parent=1 // pred_region
      %63 = dma.done [#allocation6], 256
    $region49: #{tpu_custom_call.1} parent=1 // pred_fallthru
      _
    %v64 = vld [vmem:[%s0] sm:$0xff]
    %v65 = vld [vmem:[%s0 + $0x8] sm:$0xff]
    %v66 = vld [vmem:[#allocation2] sm:$0xff]
    %v67 = vld [vmem:[#allocation2 + $0x8] sm:$0xff]
    %v68 = vld [vmem:[%s3] sm:$0xff]
    %v69 = vld [vmem:[%s3 + $0x8] sm:$0xff]
    %v70 = vld [vmem:[%s3 + $0x10] sm:$0xff]
    %v71 = vld [vmem:[%s3 + $0x18] sm:$0xff]
    %vm72 = vcmask 261120
    %v74 = vsel %vm72, %v64, 0
    %v77 = vsel %vm72, %v65, 0
    %79 = vmatprep.subr.mxu0 0.0
    %80 = vmatpush1.msra.mxu0 0.0
    %81 = vmatprep.subr.mxu0 0.0
    %82 = vmatpush1.msra.mxu0 0.0
    %83 = vmatprep.subr.mxu0 0.0
    %84 = vmatpush1.msra.mxu0 0.0
    %85 = vmatprep.subr.mxu0 0.0
    %86 = vmatpush1.msra.mxu0 0.0
    %87 = vmatprep.subr.mxu0 0.0
    %88 = vmatpush1.msra.mxu0 0.0
    %89 = vmatprep.subr.mxu0 0.0
    %90 = vmatpush1.msra.mxu0 0.0
    %91 = vmatprep.subr.mxu0 0.0
    %92 = vmatpush1.msra.mxu0 0.0
    %93 = vmatprep.subr.mxu0 0.0
    %94 = vmatpush1.msra.mxu0 0.0
    %95 = vmatprep.subr.mxu0 0.0
    %96 = vmatpush1.msra.mxu0 0.0
    %97 = vmatprep.subr.mxu0 0.0
    %98 = vmatpush1.msra.mxu0 0.0
    %99 = vmatprep.subr.mxu0 0.0
    %100 = vmatpush1.msra.mxu0 0.0
    %101 = vmatprep.subr.mxu0 0.0
    %102 = vmatpush1.msra.mxu0 0.0
    %103 = vmatprep.subr.mxu0 0.0
    %104 = vmatpush1.msra.mxu0 %v71
    %105 = vmatprep.subr.mxu0 0.0
    %106 = vmatpush1.msra.mxu0 %v70
    %107 = vmatprep.subr.mxu0 0.0
    %108 = vmatpush1.msra.mxu0 %v69
    %109 = vmatprep.subr.mxu0 0.0
    %110 = vmatpush1.msra.mxu0 %v68
    %111 = vmatprep.subr.mxu0 0.0
    %112 = vmatpush2.msra.mxu0 0.0
    %113 = vmatprep.subr.mxu0 0.0
    %114 = vmatpush2.msra.mxu0 0.0
    %115 = vmatprep.subr.mxu0 0.0
    %116 = vmatpush2.msra.mxu0 0.0
    %117 = vmatprep.subr.mxu0 0.0
    %118 = vmatpush2.msra.mxu0 0.0
    %119 = vmatprep.subr.mxu0 0.0
    %120 = vmatpush2.msra.mxu0 0.0
    %121 = vmatprep.subr.mxu0 0.0
    %122 = vmatpush2.msra.mxu0 0.0
    %123 = vmatprep.subr.mxu0 0.0
    %124 = vmatpush2.msra.mxu0 0.0
    %125 = vmatprep.subr.mxu0 0.0
    %126 = vmatpush2.msra.mxu0 0.0
    %127 = vmatprep.subr.mxu0 0.0
    %128 = vmatpush2.msra.mxu0 0.0
    %129 = vmatprep.subr.mxu0 0.0
    %130 = vmatpush2.msra.mxu0 0.0
    %131 = vmatprep.subr.mxu0 0.0
    %132 = vmatpush2.msra.mxu0 0.0
    %133 = vmatprep.subr.mxu0 0.0
    %134 = vmatpush2.msra.mxu0 0.0
    %135 = vmatprep.subr.mxu0 0.0
    %136 = vmatpush2.msra.mxu0 0.0
    %137 = vmatprep.subr.mxu0 0.0
    %138 = vmatpush2.msra.mxu0 0.0
    %139 = vmatprep.subr.mxu0 0.0
    %140 = vmatpush2.msra.mxu0 0.0
    %141 = vmatprep.subr.mxu0 0.0
    %142 = vmatpush2.msra.mxu0 0.0
    %143 = vmatprep.mubr.f32.mxu0 0.0
    %144 = vmatmul.mubr.f32.gmra.mxu0 %v74
    %v145 = vpop.f32.mrf.mxu0
    %v146 = vadd.f32 0.0, %v145
    %v147 = vpop.f32.mrf.mxu0
    %148 = vmatprep.mubr.f32.mxu0 0.0
    %149 = vmatmul.mubr.f32.gmra.mxu0 %v77
    %v150 = vpop.f32.mrf.mxu0
    %v151 = vadd.f32 0.0, %v150
    %v152 = vpop.f32.mrf.mxu0
    %153 = vdwg.mxu0
    %v154 = vld [vmem:[%s4] sm:$0xff]
    %v155 = vld [vmem:[%s4 + $0x8] sm:$0xff]
    %v156 = vld [vmem:[%s4 + $0x10] sm:$0xff]
    %v157 = vld [vmem:[%s4 + $0x18] sm:$0xff]
    %v159 = vsel %vm72, %v66, 0
    %v162 = vsel %vm72, %v67, 0
    %164 = vmatprep.subr.mxu0 0.0
    %165 = vmatpush1.msra.mxu0 0.0
    %166 = vmatprep.subr.mxu0 0.0
    %167 = vmatpush1.msra.mxu0 0.0
    %168 = vmatprep.subr.mxu0 0.0
    %169 = vmatpush1.msra.mxu0 0.0
    %170 = vmatprep.subr.mxu0 0.0
    %171 = vmatpush1.msra.mxu0 0.0
    %172 = vmatprep.subr.mxu0 0.0
    %173 = vmatpush1.msra.mxu0 0.0
    %174 = vmatprep.subr.mxu0 0.0
    %175 = vmatpush1.msra.mxu0 0.0
    %176 = vmatprep.subr.mxu0 0.0
    %177 = vmatpush1.msra.mxu0 0.0
    %178 = vmatprep.subr.mxu0 0.0
    %179 = vmatpush1.msra.mxu0 0.0
    %180 = vmatprep.subr.mxu0 0.0
    %181 = vmatpush1.msra.mxu0 0.0
    %182 = vmatprep.subr.mxu0 0.0
    %183 = vmatpush1.msra.mxu0 0.0
    %184 = vmatprep.subr.mxu0 0.0
    %185 = vmatpush1.msra.mxu0 0.0
    %186 = vmatprep.subr.mxu0 0.0
    %187 = vmatpush1.msra.mxu0 0.0
    %188 = vmatprep.subr.mxu0 0.0
    %189 = vmatpush1.msra.mxu0 %v157
    %190 = vmatprep.subr.mxu0 0.0
    %191 = vmatpush1.msra.mxu0 %v156
    %192 = vmatprep.subr.mxu0 0.0
    %193 = vmatpush1.msra.mxu0 %v155
    %194 = vmatprep.subr.mxu0 0.0
    %195 = vmatpush1.msra.mxu0 %v154
    %196 = vmatprep.subr.mxu0 0.0
    %197 = vmatpush2.msra.mxu0 0.0
    %198 = vmatprep.subr.mxu0 0.0
    %199 = vmatpush2.msra.mxu0 0.0
    %200 = vmatprep.subr.mxu0 0.0
    %201 = vmatpush2.msra.mxu0 0.0
    %202 = vmatprep.subr.mxu0 0.0
    %203 = vmatpush2.msra.mxu0 0.0
    %204 = vmatprep.subr.mxu0 0.0
    %205 = vmatpush2.msra.mxu0 0.0
    %206 = vmatprep.subr.mxu0 0.0
    %207 = vmatpush2.msra.mxu0 0.0
    %208 = vmatprep.subr.mxu0 0.0
    %209 = vmatpush2.msra.mxu0 0.0
    %210 = vmatprep.subr.mxu0 0.0
    %211 = vmatpush2.msra.mxu0 0.0
    %212 = vmatprep.subr.mxu0 0.0
    %213 = vmatpush2.msra.mxu0 0.0
    %214 = vmatprep.subr.mxu0 0.0
    %215 = vmatpush2.msra.mxu0 0.0
    %216 = vmatprep.subr.mxu0 0.0
    %217 = vmatpush2.msra.mxu0 0.0
    %218 = vmatprep.subr.mxu0 0.0
    %219 = vmatpush2.msra.mxu0 0.0
    %220 = vmatprep.subr.mxu0 0.0
    %221 = vmatpush2.msra.mxu0 0.0
    %222 = vmatprep.subr.mxu0 0.0
    %223 = vmatpush2.msra.mxu0 0.0
    %224 = vmatprep.subr.mxu0 0.0
    %225 = vmatpush2.msra.mxu0 0.0
    %226 = vmatprep.subr.mxu0 0.0
    %227 = vmatpush2.msra.mxu0 0.0
    %228 = vmatprep.mubr.f32.mxu0 0.0
    %229 = vmatmul.mubr.f32.gmra.mxu0 %v159
    %v230 = vpop.f32.mrf.mxu0
    %v231 = vadd.f32 0.0, %v230
    %v232 = vpop.f32.mrf.mxu0
    %233 = vmatprep.mubr.f32.mxu0 0.0
    %234 = vmatmul.mubr.f32.gmra.mxu0 %v162
    %v235 = vpop.f32.mrf.mxu0
    %v236 = vadd.f32 0.0, %v235
    %v237 = vpop.f32.mrf.mxu0
    %238 = vdwg.mxu0
    %v239 = vld [vmem:[%s5] sm:$0xff]
    %v240 = vld [vmem:[%s5 + $0x8] sm:$0xff]
    %v241 = vld [vmem:[%s5 + $0x10] sm:$0xff]
    %v242 = vld [vmem:[%s5 + $0x18] sm:$0xff]
    %243 = vmatprep.subr.mxu0 0.0
    %244 = vmatpush1.msra.mxu0 0.0
    %245 = vmatprep.subr.mxu0 0.0
    %246 = vmatpush1.msra.mxu0 0.0
    %247 = vmatprep.subr.mxu0 0.0
    %248 = vmatpush1.msra.mxu0 0.0
    %249 = vmatprep.subr.mxu0 0.0
    %250 = vmatpush1.msra.mxu0 0.0
    %251 = vmatprep.subr.mxu0 0.0
    %252 = vmatpush1.msra.mxu0 0.0
    %253 = vmatprep.subr.mxu0 0.0
    %254 = vmatpush1.msra.mxu0 0.0
    %255 = vmatprep.subr.mxu0 0.0
    %256 = vmatpush1.msra.mxu0 0.0
    %257 = vmatprep.subr.mxu0 0.0
    %258 = vmatpush1.msra.mxu0 0.0
    %259 = vmatprep.subr.mxu0 0.0
    %260 = vmatpush1.msra.mxu0 0.0
    %261 = vmatprep.subr.mxu0 0.0
    %262 = vmatpush1.msra.mxu0 0.0
    %263 = vmatprep.subr.mxu0 0.0
    %264 = vmatpush1.msra.mxu0 0.0
    %265 = vmatprep.subr.mxu0 0.0
    %266 = vmatpush1.msra.mxu0 0.0
    %267 = vmatprep.subr.mxu0 0.0
    %268 = vmatpush1.msra.mxu0 %v242
    %269 = vmatprep.subr.mxu0 0.0
    %270 = vmatpush1.msra.mxu0 %v241
    %271 = vmatprep.subr.mxu0 0.0
    %272 = vmatpush1.msra.mxu0 %v240
    %273 = vmatprep.subr.mxu0 0.0
    %274 = vmatpush1.msra.mxu0 %v239
    %275 = vmatprep.subr.mxu0 0.0
    %276 = vmatpush2.msra.mxu0 0.0
    %277 = vmatprep.subr.mxu0 0.0
    %278 = vmatpush2.msra.mxu0 0.0
    %279 = vmatprep.subr.mxu0 0.0
    %280 = vmatpush2.msra.mxu0 0.0
    %281 = vmatprep.subr.mxu0 0.0
    %282 = vmatpush2.msra.mxu0 0.0
    %283 = vmatprep.subr.mxu0 0.0
    %284 = vmatpush2.msra.mxu0 0.0
    %285 = vmatprep.subr.mxu0 0.0
    %286 = vmatpush2.msra.mxu0 0.0
    %287 = vmatprep.subr.mxu0 0.0
    %288 = vmatpush2.msra.mxu0 0.0
    %289 = vmatprep.subr.mxu0 0.0
    %290 = vmatpush2.msra.mxu0 0.0
    %291 = vmatprep.subr.mxu0 0.0
    %292 = vmatpush2.msra.mxu0 0.0
    %293 = vmatprep.subr.mxu0 0.0
    %294 = vmatpush2.msra.mxu0 0.0
    %295 = vmatprep.subr.mxu0 0.0
    %296 = vmatpush2.msra.mxu0 0.0
    %297 = vmatprep.subr.mxu0 0.0
    %298 = vmatpush2.msra.mxu0 0.0
    %299 = vmatprep.subr.mxu0 0.0
    %300 = vmatpush2.msra.mxu0 0.0
    %301 = vmatprep.subr.mxu0 0.0
    %302 = vmatpush2.msra.mxu0 0.0
    %303 = vmatprep.subr.mxu0 0.0
    %304 = vmatpush2.msra.mxu0 0.0
    %305 = vmatprep.subr.mxu0 0.0
    %306 = vmatpush2.msra.mxu0 0.0
    %307 = vmatprep.mubr.f32.mxu0 0.0
    %308 = vmatmul.mubr.f32.gmra.mxu0 %v159
    %v309 = vpop.f32.mrf.mxu0
    %v310 = vadd.f32 0.0, %v309
    %v311 = vpop.f32.mrf.mxu0
    %312 = vmatprep.mubr.f32.mxu0 0.0
    %313 = vmatmul.mubr.f32.gmra.mxu0 %v162
    %v314 = vpop.f32.mrf.mxu0
    %v315 = vadd.f32 0.0, %v314
    %v316 = vpop.f32.mrf.mxu0
    %317 = vdwg.mxu0
    %v318 = vld [vmem:[#allocation5] sm:$0xff]
    %v319 = vld [vmem:[#allocation5 + $0x8] sm:$0xff]
    %vm320 = vcmask 64512
    %v322 = vsel %vm320, %v146, 0
    %v325 = vsel %vm320, %v151, 0
    %v328 = vsel %vm320, %v231, 0
    %v331 = vsel %vm320, %v236, 0
    %333 = vmatprep.subr.mxu0 0.0
    %334 = vmatpush1.xpose.msra.mxu0 0.0
    %335 = vmatprep.subr.mxu0 0.0
    %336 = vmatpush1.xpose.msra.mxu0 0.0
    %337 = vmatprep.subr.mxu0 0.0
    %338 = vmatpush1.xpose.msra.mxu0 0.0
    %339 = vmatprep.subr.mxu0 0.0
    %340 = vmatpush1.xpose.msra.mxu0 0.0
    %341 = vmatprep.subr.mxu0 0.0
    %342 = vmatpush1.xpose.msra.mxu0 0.0
    %343 = vmatprep.subr.mxu0 0.0
    %344 = vmatpush1.xpose.msra.mxu0 0.0
    %345 = vmatprep.subr.mxu0 0.0
    %346 = vmatpush1.xpose.msra.mxu0 0.0
    %347 = vmatprep.subr.mxu0 0.0
    %348 = vmatpush1.xpose.msra.mxu0 0.0
    %349 = vmatprep.subr.mxu0 0.0
    %350 = vmatpush1.xpose.msra.mxu0 0.0
    %351 = vmatprep.subr.mxu0 0.0
    %352 = vmatpush1.xpose.msra.mxu0 0.0
    %353 = vmatprep.subr.mxu0 0.0
    %354 = vmatpush1.xpose.msra.mxu0 0.0
    %355 = vmatprep.subr.mxu0 0.0
    %356 = vmatpush1.xpose.msra.mxu0 0.0
    %357 = vmatprep.subr.mxu0 0.0
    %358 = vmatpush1.xpose.msra.mxu0 0.0
    %359 = vmatprep.subr.mxu0 0.0
    %360 = vmatpush1.xpose.msra.mxu0 0.0
    %361 = vmatprep.subr.mxu0 0.0
    %362 = vmatpush1.xpose.msra.mxu0 %v331
    %363 = vmatprep.subr.mxu0 0.0
    %364 = vmatpush1.xpose.msra.mxu0 %v328
    %365 = vmatprep.subr.mxu0 0.0
    %366 = vmatpush2.xpose.msra.mxu0 0.0
    %367 = vmatprep.subr.mxu0 0.0
    %368 = vmatpush2.xpose.msra.mxu0 0.0
    %369 = vmatprep.subr.mxu0 0.0
    %370 = vmatpush2.xpose.msra.mxu0 0.0
    %371 = vmatprep.subr.mxu0 0.0
    %372 = vmatpush2.xpose.msra.mxu0 0.0
    %373 = vmatprep.subr.mxu0 0.0
    %374 = vmatpush2.xpose.msra.mxu0 0.0
    %375 = vmatprep.subr.mxu0 0.0
    %376 = vmatpush2.xpose.msra.mxu0 0.0
    %377 = vmatprep.subr.mxu0 0.0
    %378 = vmatpush2.xpose.msra.mxu0 0.0
    %379 = vmatprep.subr.mxu0 0.0
    %380 = vmatpush2.xpose.msra.mxu0 0.0
    %381 = vmatprep.subr.mxu0 0.0
    %382 = vmatpush2.xpose.msra.mxu0 0.0
    %383 = vmatprep.subr.mxu0 0.0
    %384 = vmatpush2.xpose.msra.mxu0 0.0
    %385 = vmatprep.subr.mxu0 0.0
    %386 = vmatpush2.xpose.msra.mxu0 0.0
    %387 = vmatprep.subr.mxu0 0.0
    %388 = vmatpush2.xpose.msra.mxu0 0.0
    %389 = vmatprep.subr.mxu0 0.0
    %390 = vmatpush2.xpose.msra.mxu0 0.0
    %391 = vmatprep.subr.mxu0 0.0
    %392 = vmatpush2.xpose.msra.mxu0 0.0
    %393 = vmatprep.subr.mxu0 0.0
    %394 = vmatpush2.xpose.msra.mxu0 0.0
    %395 = vmatprep.subr.mxu0 0.0
    %396 = vmatpush2.xpose.msra.mxu0 0.0
    %397 = vmatprep.mubr.f32.mxu0 0.0
    %398 = vmatmul.mubr.f32.gmra.mxu0 %v322
    %v399 = vpop.f32.mrf.mxu0
    %v400 = vadd.f32 %v318, %v399
    %v401 = vpop.f32.mrf.mxu0
    %402 = vmatprep.mubr.f32.mxu0 0.0
    %403 = vmatmul.mubr.f32.gmra.mxu0 %v325
    %v404 = vpop.f32.mrf.mxu0
    %v405 = vadd.f32 %v319, %v404
    %v406 = vpop.f32.mrf.mxu0
    %407 = vdwg.mxu0
    %vm408 = vcmask 130048
    %v409 = vsel %vm408, %v400, -inf
    %410 = vmax.xlane.f32.xlu0 %v409
    %v411 = vpop.xlane.xlu0 %410
    %v412 = vsel %vm408, %v405, -inf
    %413 = vmax.xlane.f32.xlu0 %v412
    %v414 = vpop.xlane.xlu0 %413
    %v415 = vsub.f32 %v400, %v411
    %v416 = vsub.f32 %v405, %v414
    %v417 = vmul.f32 %v415, 1.442695
    %v418 = vpow.pop %v417
    %v419 = vmul.f32 %v416, 1.442695
    %v420 = vpow.pop %v419
    %v421 = vsel %vm408, %v418, 0.0
    %422 = vadd.xlane.f32.xlu0 %v421
    %v423 = vpop.xlane.xlu0 %422
    %v424 = vsel %vm408, %v420, 0.0
    %425 = vadd.xlane.f32.xlu0 %v424
    %v426 = vpop.xlane.xlu0 %425
    %v427 = vrcp.pop %v423
    %v428 = vrcp.pop %v426
    %v429 = vmul.f32 %v418, %v427
    %v430 = vmul.f32 %v420, %v428
    %v432 = vsel %vm408, %v429, 0
    %v435 = vsel %vm408, %v430, 0
    %437 = vmatprep.subr.mxu0 0.0
    %438 = vmatpush1.msra.mxu0 0.0
    %439 = vmatprep.subr.mxu0 0.0
    %440 = vmatpush1.msra.mxu0 0.0
    %441 = vmatprep.subr.mxu0 0.0
    %442 = vmatpush1.msra.mxu0 0.0
    %443 = vmatprep.subr.mxu0 0.0
    %444 = vmatpush1.msra.mxu0 0.0
    %445 = vmatprep.subr.mxu0 0.0
    %446 = vmatpush1.msra.mxu0 0.0
    %447 = vmatprep.subr.mxu0 0.0
    %448 = vmatpush1.msra.mxu0 0.0
    %449 = vmatprep.subr.mxu0 0.0
    %450 = vmatpush1.msra.mxu0 0.0
    %451 = vmatprep.subr.mxu0 0.0
    %452 = vmatpush1.msra.mxu0 0.0
    %453 = vmatprep.subr.mxu0 0.0
    %454 = vmatpush1.msra.mxu0 0.0
    %455 = vmatprep.subr.mxu0 0.0
    %456 = vmatpush1.msra.mxu0 0.0
    %457 = vmatprep.subr.mxu0 0.0
    %458 = vmatpush1.msra.mxu0 0.0
    %459 = vmatprep.subr.mxu0 0.0
    %460 = vmatpush1.msra.mxu0 0.0
    %461 = vmatprep.subr.mxu0 0.0
    %462 = vmatpush1.msra.mxu0 0.0
    %463 = vmatprep.subr.mxu0 0.0
    %464 = vmatpush1.msra.mxu0 0.0
    %465 = vmatprep.subr.mxu0 0.0
    %466 = vmatpush1.msra.mxu0 %v315
    %467 = vmatprep.subr.mxu0 0.0
    %468 = vmatpush1.msra.mxu0 %v310
    %469 = vmatprep.subr.mxu0 0.0
    %470 = vmatpush2.msra.mxu0 0.0
    %471 = vmatprep.subr.mxu0 0.0
    %472 = vmatpush2.msra.mxu0 0.0
    %473 = vmatprep.subr.mxu0 0.0
    %474 = vmatpush2.msra.mxu0 0.0
    %475 = vmatprep.subr.mxu0 0.0
    %476 = vmatpush2.msra.mxu0 0.0
    %477 = vmatprep.subr.mxu0 0.0
    %478 = vmatpush2.msra.mxu0 0.0
    %479 = vmatprep.subr.mxu0 0.0
    %480 = vmatpush2.msra.mxu0 0.0
    %481 = vmatprep.subr.mxu0 0.0
    %482 = vmatpush2.msra.mxu0 0.0
    %483 = vmatprep.subr.mxu0 0.0
    %484 = vmatpush2.msra.mxu0 0.0
    %485 = vmatprep.subr.mxu0 0.0
    %486 = vmatpush2.msra.mxu0 0.0
    %487 = vmatprep.subr.mxu0 0.0
    %488 = vmatpush2.msra.mxu0 0.0
    %489 = vmatprep.subr.mxu0 0.0
    %490 = vmatpush2.msra.mxu0 0.0
    %491 = vmatprep.subr.mxu0 0.0
    %492 = vmatpush2.msra.mxu0 0.0
    %493 = vmatprep.subr.mxu0 0.0
    %494 = vmatpush2.msra.mxu0 0.0
    %495 = vmatprep.subr.mxu0 0.0
    %496 = vmatpush2.msra.mxu0 0.0
    %497 = vmatprep.subr.mxu0 0.0
    %498 = vmatpush2.msra.mxu0 0.0
    %499 = vmatprep.subr.mxu0 0.0
    %500 = vmatpush2.msra.mxu0 0.0
    %501 = vmatprep.mubr.f32.mxu0 0.0
    %502 = vmatmul.mubr.f32.gmra.mxu0 %v432
    %v503 = vpop.f32.mrf.mxu0
    %v504 = vadd.f32 0.0, %v503
    %v505 = vpop.f32.mrf.mxu0
    %506 = vmatprep.mubr.f32.mxu0 0.0
    %507 = vmatmul.mubr.f32.gmra.mxu0 %v435
    %v508 = vpop.f32.mrf.mxu0
    %v509 = vadd.f32 0.0, %v508
    %v510 = vpop.f32.mrf.mxu0
    %511 = vdwg.mxu0
    %v512 = vsub.f32 %v64, %v504
    %v513 = vsub.f32 %v65, %v509
    %v514 = vld [vmem:[%s6] sm:$0xff]
    %v515 = vld [vmem:[%s6 + $0x8] sm:$0xff]
    %v516 = vld [vmem:[%s6 + $0x10] sm:$0xff]
    %v517 = vld [vmem:[%s6 + $0x18] sm:$0xff]
    %v518 = vld [vmem:[%s7] sm:$0x1]
    %v520 = vlaneseq
    %v521 = vshrl.u32 %v520, 7
    %v522 = vsub.s32 0, %v521
    %v523 = vrot.slane %v518, %v522
    %v526 = vsel %vm72, %v512, 0
    %v529 = vsel %vm72, %v513, 0
    %531 = vmatprep.subr.mxu0 0.0
    %532 = vmatpush1.msra.mxu0 0.0
    %533 = vmatprep.subr.mxu0 0.0
    %534 = vmatpush1.msra.mxu0 0.0
    %535 = vmatprep.subr.mxu0 0.0
    %536 = vmatpush1.msra.mxu0 0.0
    %537 = vmatprep.subr.mxu0 0.0
    %538 = vmatpush1.msra.mxu0 0.0
    %539 = vmatprep.subr.mxu0 0.0
    %540 = vmatpush1.msra.mxu0 0.0
    %541 = vmatprep.subr.mxu0 0.0
    %542 = vmatpush1.msra.mxu0 0.0
    %543 = vmatprep.subr.mxu0 0.0
    %544 = vmatpush1.msra.mxu0 0.0
    %545 = vmatprep.subr.mxu0 0.0
    %546 = vmatpush1.msra.mxu0 0.0
    %547 = vmatprep.subr.mxu0 0.0
    %548 = vmatpush1.msra.mxu0 0.0
    %549 = vmatprep.subr.mxu0 0.0
    %550 = vmatpush1.msra.mxu0 0.0
    %551 = vmatprep.subr.mxu0 0.0
    %552 = vmatpush1.msra.mxu0 0.0
    %553 = vmatprep.subr.mxu0 0.0
    %554 = vmatpush1.msra.mxu0 0.0
    %555 = vmatprep.subr.mxu0 0.0
    %556 = vmatpush1.msra.mxu0 %v517
    %557 = vmatprep.subr.mxu0 0.0
    %558 = vmatpush1.msra.mxu0 %v516
    %559 = vmatprep.subr.mxu0 0.0
    %560 = vmatpush1.msra.mxu0 %v515
    %561 = vmatprep.subr.mxu0 0.0
    %562 = vmatpush1.msra.mxu0 %v514
    %563 = vmatprep.subr.mxu0 0.0
    %564 = vmatpush2.msra.mxu0 0.0
    %565 = vmatprep.subr.mxu0 0.0
    %566 = vmatpush2.msra.mxu0 0.0
    %567 = vmatprep.subr.mxu0 0.0
    %568 = vmatpush2.msra.mxu0 0.0
    %569 = vmatprep.subr.mxu0 0.0
    %570 = vmatpush2.msra.mxu0 0.0
    %571 = vmatprep.subr.mxu0 0.0
    %572 = vmatpush2.msra.mxu0 0.0
    %573 = vmatprep.subr.mxu0 0.0
    %574 = vmatpush2.msra.mxu0 0.0
    %575 = vmatprep.subr.mxu0 0.0
    %576 = vmatpush2.msra.mxu0 0.0
    %577 = vmatprep.subr.mxu0 0.0
    %578 = vmatpush2.msra.mxu0 0.0
    %579 = vmatprep.subr.mxu0 0.0
    %580 = vmatpush2.msra.mxu0 0.0
    %581 = vmatprep.subr.mxu0 0.0
    %582 = vmatpush2.msra.mxu0 0.0
    %583 = vmatprep.subr.mxu0 0.0
    %584 = vmatpush2.msra.mxu0 0.0
    %585 = vmatprep.subr.mxu0 0.0
    %586 = vmatpush2.msra.mxu0 0.0
    %587 = vmatprep.subr.mxu0 0.0
    %588 = vmatpush2.msra.mxu0 0.0
    %589 = vmatprep.subr.mxu0 0.0
    %590 = vmatpush2.msra.mxu0 0.0
    %591 = vmatprep.subr.mxu0 0.0
    %592 = vmatpush2.msra.mxu0 0.0
    %593 = vmatprep.subr.mxu0 0.0
    %594 = vmatpush2.msra.mxu0 0.0
    %595 = vmatprep.mubr.f32.mxu0 0.0
    %596 = vmatmul.mubr.f32.gmra.mxu0 %v526
    %v597 = vpop.f32.mrf.mxu0
    %v598 = vadd.f32 %v523, %v597
    %v599 = vpop.f32.mrf.mxu0
    %600 = vmatprep.mubr.f32.mxu0 0.0
    %601 = vmatmul.mubr.f32.gmra.mxu0 %v529
    %v602 = vpop.f32.mrf.mxu0
    %v603 = vadd.f32 %v523, %v602
    %v604 = vpop.f32.mrf.mxu0
    %605 = vdwg.mxu0
    %v606 = vsel %vm72, %v598, 0.0
    %v607 = vsel %vm72, %v603, 0.0
    %v608 = vadd.f32 %v606, %v607
    %v609 = vrot.slane %v608, 4
    %v610 = vadd.f32 %v608, %v609
    %v611 = vrot.slane %v610, 2
    %v612 = vadd.f32 %v610, %v611
    %v613 = vrot.slane %v612, 1
    %v614 = vadd.f32 %v612, %v613
    %v615 = vrcp.pop 16.0
    %v616 = vmul.f32 %v614, %v615
    %v617 = vsub.f32 %v598, %v616
    %v618 = vsub.f32 %v603, %v616
    %v619 = vmul.f32 %v617, %v617
    %v620 = vmul.f32 %v618, %v618
    %v621 = vsel %vm72, %v619, 0.0
    %v622 = vsel %vm72, %v620, 0.0
    %v623 = vadd.f32 %v621, %v622
    %v624 = vrot.slane %v623, 4
    %v625 = vadd.f32 %v623, %v624
    %v626 = vrot.slane %v625, 2
    %v627 = vadd.f32 %v625, %v626
    %v628 = vrot.slane %v627, 1
    %v629 = vadd.f32 %v627, %v628
    %v630 = vmul.f32 %v629, %v615
    %v631 = vmax.f32 %v630, 0.0
    %v632 = vadd.f32 %v631, 1e-05
    %v633 = vrsqrt.pop %v632
    %v634 = vld [vmem:[%s8] sm:$0x1]
    %v635 = vmul.f32 %v633, %v634
    %v636 = vlaneseq
    %v637 = vshrl.u32 %v636, 7
    %v638 = vsub.s32 0, %v637
    %v639 = vrot.slane %v635, %v638
    %v640 = vmul.f32 %v617, %v639
    %v641 = vmul.f32 %v618, %v639
    %v642 = vld [vmem:[%s9] sm:$0x1]
    %v644 = vlaneseq
    %v645 = vshrl.u32 %v644, 7
    %v646 = vsub.s32 0, %v645
    %v647 = vrot.slane %v642, %v646
    %v649 = vadd.f32 %v640, %v647
    %v650 = vadd.f32 %v641, %v647
    %v651 = vmax.f32 %v649, 0.0
    %v652 = vmax.f32 %v650, 0.0
    %v653 = vadd.f32 %v651, %v64
    %v654 = vadd.f32 %v652, %v65
    %655 = vst.msk [vmem:[#allocation7] sm:$0xff] %vm72, %v653
    %656 = vst.msk [vmem:[#allocation7 + $0x8] sm:$0xff] %vm72, %v654
    // Predicated region
    $region50: #{tpu_custom_call.1} parent=1 // pred_check
      _
    $region51: #{tpu_custom_call.1} parent=1 // pred_check_branch
      %658 = sbr.rel (0) target = $region53
    $region52: #{tpu_custom_call.1} parent=1 // pred_region
      %s660 = ssub.s32 256, 256
      %661 = vsyncadd [#allocation4], %s660
      %s662 = sshll.u32 [#allocation7], 4
      %s663 = int_to_ptr.vmem [resolvable:$true] %s662
      %668 = dma.vmem_to_hbm [thread:$0]  %s663, 256, %s10, [#allocation4], 128, 128, 8
    $region53: #{tpu_custom_call.1} parent=1 // pred_fallthru
      _
    // Predicated region
    $region54: #{tpu_custom_call.1} parent=1 // pred_check
      _
    $region55: #{tpu_custom_call.1} parent=1 // pred_check_branch
      %670 = sbr.rel (0) target = $region57
    $region56: #{tpu_custom_call.1} parent=1 // pred_region
      %671 = dma.done [#allocation4], 256
    $region57: #{tpu_custom_call.1} parent=1 // pred_fallthru
      _
    %672 = vsyncpa [#allocation3], 1
    %673 = vsyncpa [#allocation6], 1
    %674 = vsyncpa [#allocation4], 1

</llo_original>
